<compile_context>
chip_gen: v7x
topology: tpu7x:2x2x1
jax: 0.10.0
libtpu: 0.0.40
codegen_flags: <defaults>
</compile_context>

<pallas_src>
import functools

import jax
import jax.numpy as jnp
from jax.experimental import pallas as pl
from jax.experimental.pallas import tpu as pltpu


def _int_pow(x, n):
    """x**n for a static integer n >= 1 via square-and-multiply (VPU muls only)."""
    n = int(n)
    assert n >= 1
    result = None
    base = x
    while n:
        if n & 1:
            result = base if result is None else result * base
        n >>= 1
        if n:
            base = base * base
    return result


def _gem_kernel(p_ref, x_ref, o_ref, acc_ref, *, eps, hw_total, static_p,
                low_precision_pow):
    # p_ref  : SMEM (1,) f32              -- learnable GeM exponent
    # x_ref  : VMEM (1, C_TILE, HW_TILE)  -- NCHW-native, spatial on lanes
    # o_ref  : VMEM (1, 1, C_TILE)
    # acc_ref: VMEM (1, 1, C_TILE) f32    -- running sum of x**p over HW tiles
    k = pl.program_id(2)

    @pl.when(k == 0)
    def _():
        acc_ref[...] = jnp.zeros_like(acc_ref)

    x = x_ref[...].astype(jnp.float32)
    x = jnp.maximum(x, eps)                          # clamp(min=eps)

    if static_p is not None:
        xp = _int_pow(x, static_p)                   # VPU fast path
    elif low_precision_pow:
        # Halves EUP work on v6e/v7x (bf16 EUP); accumulate stays f32.
        xp = jnp.power(x.astype(jnp.bfloat16),
                       p_ref[0].astype(jnp.bfloat16)).astype(jnp.float32)
    else:
        xp = jnp.power(x, p_ref[0])                  # EUP: exp(p * ln x)

    # Partial spatial sum over the lane axis -> (1, C_TILE); keep f32.
    acc_ref[...] += jnp.sum(xp, axis=-1)[:, None, :]

    @pl.when(k == pl.num_programs(2) - 1)
    def _():
        p = p_ref[0]
        m = acc_ref[...] * (1.0 / float(hw_total))   # mean over full H*W
        o_ref[...] = jnp.power(m, 1.0 / p).astype(o_ref.dtype)


def _largest_divisor(total, multiple, limit):
    """Largest divisor of `total` that is a multiple of `multiple` and <= limit.
    Returns None if there is no such divisor."""
    best = None
    hi = min(int(limit), int(total))
    for d in range(int(multiple), hi + 1, int(multiple)):
        if total % d == 0:
            best = d
    return best


def gem(x, p, eps=1e-6, *, static_p=None, low_precision_pow=False,
        target_block_bytes=6 << 20):
    """GeM pooling.  x: (N, C, H, W), p: (1,) -> (N, C, 1, 1)."""
    N, C, H, W = x.shape
    HW = H * W
    itemsize = jnp.dtype(x.dtype).itemsize

    # Validate static_p against the runtime p (silent mismatch would be wrong:
    # the power uses static_p but the final root uses p_ref[0]).
    if static_p is not None:
        try:
            p_val = float(jnp.asarray(p).reshape(-1)[0])
        except Exception as e:  # traced / abstract p
            raise ValueError(
                "static_p requires a concrete (non-traced) p for validation") from e
        if abs(p_val - float(static_p)) > 1e-6:
            raise ValueError(
                f"static_p={static_p} disagrees with runtime p={p_val}")

    # NCHW-native: merging H and W is a free reshape (no HBM transpose pass).
    xr = x.reshape(N, C, HW)

    # ---- Tile selection ----------------------------------------------------
    # Channel tile: multiples of 128 satisfy both the x-block sublane (mult of
    # 8) and the out-block lane (mult of 128) constraints.  Prefer >= 2 channel
    # tiles so the channel axis can shard across v7x's two TensorCores even at
    # N == 1; otherwise take the full extent (always legal).
    if C % 128 == 0 and C >= 256:
        C_TILE = _largest_divisor(C, 128, C // 2) or C
    else:
        C_TILE = C

    # Spatial tile: largest multiple-of-128 divisor of HW within the byte
    # budget; fall back to any multiple-of-128 divisor, then to full HW.
    hw_budget_elems = max(128, target_block_bytes // max(1, C_TILE * itemsize))
    HW_TILE = (_largest_divisor(HW, 128, hw_budget_elems)
               or _largest_divisor(HW, 128, HW)
               or HW)

    # If the block still exceeds the budget (e.g. HW forced to full extent),
    # shrink the channel tile so the budget is actually respected.
    if C_TILE * HW_TILE * itemsize > target_block_bytes and C % 128 == 0:
        c_budget_elems = max(128, target_block_bytes // max(1, HW_TILE * itemsize))
        C_TILE = _largest_divisor(C, 128, c_budget_elems) or C_TILE

    n_c = C // C_TILE
    n_k = HW // HW_TILE

    # Explicit VMEM ceiling: 2x double-buffered x block + out + accumulator
    # plus headroom.  Stays well inside v5e's scoped default and v7x's 64 MiB.
    x_block_bytes = C_TILE * HW_TILE * itemsize
    out_block_bytes = C_TILE * itemsize
    acc_bytes = C_TILE * 4
    vmem_limit = int(max(16 << 20,
                         2 * x_block_bytes + 2 * out_block_bytes + acc_bytes
                         + (8 << 20)))

    p_arr = jnp.asarray(p, dtype=jnp.float32).reshape((1,))

    out = pl.pallas_call(
        functools.partial(_gem_kernel, eps=float(eps), hw_total=HW,
                          static_p=static_p,
                          low_precision_pow=low_precision_pow),
        out_shape=jax.ShapeDtypeStruct((N, 1, C), x.dtype),
        grid=(N, n_c, n_k),
        in_specs=[
            pl.BlockSpec(memory_space=pltpu.SMEM),                          # p
            pl.BlockSpec((1, C_TILE, HW_TILE), lambda b, c, k: (b, c, k)),  # x
        ],
        # (N, 1, C) output: the size-1 middle dim lets the batch block dim be 1
        # (full-extent sublane), and channels stay on the lane axis.
        out_specs=pl.BlockSpec((1, 1, C_TILE), lambda b, c, k: (b, 0, c)),
        scratch_shapes=[pltpu.VMEM((1, 1, C_TILE), jnp.float32)],
        compiler_params=pltpu.CompilerParams(
            # batch and channel tiles parallel (megacore), spatial reduction
            # serial and last.
            dimension_semantics=("parallel", "parallel", "arbitrary"),
            vmem_limit_bytes=vmem_limit),
    )(p_arr, xr)

    return out.reshape(N, C, 1, 1)


def gem_ref(x, p, eps=1e-6):
    """Pure-JAX reference (mirrors the PyTorch LF.gem)."""
    pv = p[0]
    xp = jnp.power(jnp.maximum(x, eps), pv)
    m = jnp.mean(xp, axis=(2, 3), keepdims=True)
    return jnp.power(m, 1.0 / pv)


if __name__ == "__main__":
    key = jax.random.PRNGKey(0)
    N, C, H, W = 2, 4, 16, 16
    x = jax.random.uniform(key, (N, C, H, W), dtype=jnp.float32)

    # GeM.__init__: self.p = Parameter(torch.ones(1) * 3)
    p = jnp.ones((1,), dtype=jnp.float32) * 3.0
    eps = 1e-6

    out = jax.block_until_ready(gem(x, p, eps))
    ref = gem_ref(x, p, eps)
    assert out.shape == (N, C, 1, 1), out.shape
    assert jnp.allclose(out, ref, rtol=1e-5, atol=1e-5), (
        f"max abs err {jnp.max(jnp.abs(out - ref))}")

    # Static-p (VPU square-and-multiply) fast path — validated against p.
    out_fast = jax.block_until_ready(gem(x, p, eps, static_p=3))
    assert jnp.allclose(out_fast, ref, rtol=1e-5, atol=1e-5), (
        f"max abs err (static_p) {jnp.max(jnp.abs(out_fast - ref))}")

    print("KERNEL_OK")
</pallas_src>

<mosaic_0001>
module attributes {stable_mosaic.version = 11 : i64} {
  func.func @_gem_kernel(%arg0: i32, %arg1: i32, %arg2: i32, %arg3: memref<1xf32, #tpu.memory_space<smem>>, %arg4: memref<1x4x256xf32, #tpu.memory_space<vmem>>, %arg5: memref<1x1x4xf32, #tpu.memory_space<vmem>>, %arg6: memref<1x1x4xf32, #tpu.memory_space<vmem>>) attributes {dimension_semantics = [#tpu.dimension_semantics<parallel>, #tpu.dimension_semantics<parallel>, #tpu.dimension_semantics<arbitrary>], iteration_bounds = array<i64: 2, 1, 1>, scalar_prefetch = 0 : i64, scratch_operands = 1 : i64, tpu.core_type = #tpu.core_type<tc>, window_params = [{transform_indices = @transform_0, window_bounds = array<i64: 1>}, {transform_indices = @transform_1, window_bounds = array<i64: 1, 4, 256>}, {transform_indices = @transform_2, window_bounds = array<i64: 1, 1, 4>}]} {
    %c0_i32 = arith.constant 0 : i32
    %0 = arith.cmpi eq, %arg2, %c0_i32 : i32
    %1 = arith.extui %0 : i1 to i32
    %c0_i32_0 = arith.constant 0 : i32
    %2 = arith.cmpi ne, %1, %c0_i32_0 : i32
    scf.if %2 {
      %cst_13 = arith.constant 0.000000e+00 : f32
      %17 = vector.broadcast %cst_13 : f32 to vector<1x1x4xf32>
      %c0_14 = arith.constant 0 : index
      %c0_15 = arith.constant 0 : index
      %c0_16 = arith.constant 0 : index
      %18 = vector.load %arg6[%c0_14, %c0_15, %c0_16] : memref<1x1x4xf32, #tpu.memory_space<vmem>>, vector<1x1x4xf32>
      tpu.vector_store %arg6[%c0_14, %c0_15, %c0_16], %17 {strides = array<i32>} : memref<1x1x4xf32, #tpu.memory_space<vmem>>, vector<1x1x4xf32>,
    } else {
    }
    %c0 = arith.constant 0 : index
    %c0_1 = arith.constant 0 : index
    %c0_2 = arith.constant 0 : index
    %3 = vector.load %arg4[%c0, %c0_1, %c0_2] : memref<1x4x256xf32, #tpu.memory_space<vmem>>, vector<1x4x256xf32>
    %cst = arith.constant 9.99999997E-7 : f32
    %4 = vector.broadcast %cst : f32 to vector<1x4x256xf32>
    %5 = arith.maximumf %3, %4 : vector<1x4x256xf32>
    %c0_3 = arith.constant 0 : index
    %6 = memref.load %arg3[%c0_3] : memref<1xf32, #tpu.memory_space<smem>>
    %7 = vector.broadcast %6 : f32 to vector<1x4x256xf32>
    %8 = math.powf %5, %7 : vector<1x4x256xf32>
    %c0_4 = arith.constant 0 : index
    %c0_5 = arith.constant 0 : index
    %c0_6 = arith.constant 0 : index
    %9 = vector.load %arg6[%c0_4, %c0_5, %c0_6] : memref<1x1x4xf32, #tpu.memory_space<vmem>>, vector<1x1x4xf32>
    %cst_7 = arith.constant dense<0.000000e+00> : vector<1x4xf32>
    %10 = vector.multi_reduction <add>, %8, %cst_7 [2] : vector<1x4x256xf32> to vector<1x4xf32>
    %11 = vector.shape_cast %10 : vector<1x4xf32> to vector<1x1x4xf32>
    %12 = arith.addf %9, %11 : vector<1x1x4xf32>
    %c0_8 = arith.constant 0 : index
    %c0_9 = arith.constant 0 : index
    %c0_10 = arith.constant 0 : index
    %13 = vector.load %arg6[%c0_8, %c0_9, %c0_10] : memref<1x1x4xf32, #tpu.memory_space<vmem>>, vector<1x1x4xf32>
    tpu.vector_store %arg6[%c0_8, %c0_9, %c0_10], %12 {strides = array<i32>} : memref<1x1x4xf32, #tpu.memory_space<vmem>>, vector<1x1x4xf32>,
    %c0_i32_11 = arith.constant 0 : i32
    %14 = arith.cmpi eq, %arg2, %c0_i32_11 : i32
    %15 = arith.extui %14 : i1 to i32
    %c0_i32_12 = arith.constant 0 : i32
    %16 = arith.cmpi ne, %15, %c0_i32_12 : i32
    scf.if %16 {
      %c0_13 = arith.constant 0 : index
      %17 = memref.load %arg3[%c0_13] : memref<1xf32, #tpu.memory_space<smem>>
      %c0_14 = arith.constant 0 : index
      %c0_15 = arith.constant 0 : index
      %c0_16 = arith.constant 0 : index
      %18 = vector.load %arg6[%c0_14, %c0_15, %c0_16] : memref<1x1x4xf32, #tpu.memory_space<vmem>>, vector<1x1x4xf32>
      %cst_17 = arith.constant 3.906250e-03 : f32
      %19 = vector.broadcast %cst_17 : f32 to vector<1x1x4xf32>
      %20 = arith.mulf %18, %19 : vector<1x1x4xf32>
      %cst_18 = arith.constant 1.000000e+00 : f32
      %21 = arith.divf %cst_18, %17 : f32
      %22 = vector.broadcast %21 : f32 to vector<1x1x4xf32>
      %23 = math.powf %20, %22 : vector<1x1x4xf32>
      %c0_19 = arith.constant 0 : index
      %c0_20 = arith.constant 0 : index
      %c0_21 = arith.constant 0 : index
      %24 = vector.load %arg5[%c0_19, %c0_20, %c0_21] : memref<1x1x4xf32, #tpu.memory_space<vmem>>, vector<1x1x4xf32>
      tpu.vector_store %arg5[%c0_19, %c0_20, %c0_21], %23 {strides = array<i32>} : memref<1x1x4xf32, #tpu.memory_space<vmem>>, vector<1x1x4xf32>,
    } else {
    }
    return
  }
  func.func @transform_0(%arg0: i32, %arg1: i32, %arg2: i32) -> i32 {
    %c0_i32 = arith.constant 0 : i32
    %c0_i32_0 = arith.constant 0 : i32
    return %c0_i32 : i32
  }
  func.func @transform_1(%arg0: i32, %arg1: i32, %arg2: i32) -> (i32, i32, i32) {
    %c0_i32 = arith.constant 0 : i32
    return %arg0, %arg1, %arg2 : i32, i32, i32
  }
  func.func @transform_2(%arg0: i32, %arg1: i32, %arg2: i32) -> (i32, i32, i32) {
    %c0_i32 = arith.constant 0 : i32
    %c0_i32_0 = arith.constant 0 : i32
    return %arg0, %c0_i32, %arg1 : i32, i32, i32
  }
}

</mosaic_0001>

<llo_original>
// kernel: tpu_custom_call.1
$region0: #{tpu_custom_call.1}
  #allocation0 [shape = 'u32[]', space=smem, size = 0x4, offset = 0x4, fixed_abs, tag = 'smem constant byte address 0x4 - core index']
  #allocation1 [shape = 'u32[144,128]{1,0:T(1,128)}', space=vmem, size = 0x12000, scoped, tag = 'internal scratch']
  #allocation2 [shape = 'f32[1,1,4]{2,1,0:T(1,128)}', space=vmem, size = 0x200, scoped, tag = 'scratch operand']
  #allocation3 [shape = 'f32[1]{0:T(128)S(6)}', space=smem, size = 0x200, scoped, tag = 'scoped memory for tpu_custom_call.1']
  %s0 = inlined_call_operand.<no memory space> [shape: f32[1], index: 0, kind: input, shape index: {}]
  %s1 = inlined_call_operand.hbm [shape: f32[2,4,256], index: 1, kind: input, shape index: {}]
  %s2 = inlined_call_operand.hbm [shape: f32[2,1,4], index: 2, kind: output, shape index: {}]
  %s3 = sld [smem:[#allocation0]]
  $region53: #{tpu_custom_call.1} parent=0
    _
  %s5 = ssub.s32 1, %s3
  %s6 = scalar_select 0, %s5, %s3
  %7 = sst [smem:[#allocation3]] %s0
  $region1: #{tpu_custom_call.1} parent=0
    #allocation4 [shape = 'u8[8192]{0}', space=vmem, size = 0x2000, scoped, tag = 'input window, operand 1']
    #allocation5 [shape = 's32[2]{0}', space=sflag, size = 0x8, scoped, tag = 'scoped memory for tpu_custom_call.1']
    #allocation6 [shape = 's32[2]{0}', space=sflag, size = 0x8, scoped, tag = 'scoped memory for tpu_custom_call.1']
    #allocation7 [shape = 'u8[1024]{0}', space=vmem, size = 0x400, scoped, tag = 'output window, operand 0']
    %8 = vsyncpa [#allocation5], 0
    %s9 = scalar_lea.sflag [#allocation5], 1
    %10 = vsyncpa %s9, 0
    %11 = vsyncpa [#allocation6], 0
    %s12 = scalar_lea.sflag [#allocation6], 1
    %13 = vsyncpa %s12, 0
    loop: start=0, step=1, limit=4
    $region2: #{tpu_custom_call.1} parent=1 // loop_pre_header
      _
    $region3: #{tpu_custom_call.1} parent=1 // loop_header
      %s15 = sphi 0, %s19
      %p16 = scmp.ge.s32.totalorder %s15, 4
      %s22 = sphi 0, %s41
      %s23 = sphi 0, %s37
      %s24 = sphi 0, %s33
      %s25 = sphi 0, %s22
      %s26 = sphi 0, %s23
      %s27 = sphi 0, %s24
      %s28 = sphi 0, %s25
      %s29 = sphi 0, %s26
      %s30 = sphi 0, %s27
      %s42 = sphi 0, %s42
      %s44 = sphi 0, %s42
      %s45 = sphi 0, %s44
      %s59 = sphi 0, %s45
      %s69 = sphi 0, %s71
      %s72 = sphi 0, %s69
      %s73 = sphi 0, %s72
      %s89 = sphi 0, %s73
      %s97 = sphi 0, %s99
      %s100 = sphi 0, %s97
      %s101 = sphi 0, %s100
      %s117 = sphi 0, %s101
    $region4: #{tpu_custom_call.1} parent=1 // loop_header_branch
      %18 = sbr.rel (%p16) target = $region8
    $region5: #{tpu_custom_call.1} parent=1 // loop_body
      %s20 = ssub.s32 %s15, 1
      %s21 = ssub.s32 %s15, 2
      %s31 = sadd.s32 1, %s24
      %p32 = scmp.ge.s32.totalorder %s31, 1
      %s33 = scalar_select %p32, 0, %s31
      %s34 = sadd.s32 1, %s23
      %s35 = scalar_select %p32, %s34, %s23
      %p36 = scmp.ge.s32.totalorder %s35, 1
      %s37 = scalar_select %p36, 0, %s35
      %s38 = sadd.s32 1, %s22
      %s39 = scalar_select %p36, %s38, %s22
      %p40 = scmp.ge.s32.totalorder %s39, 2
      %s41 = scalar_select %p40, 0, %s39
      %s43 = sadd.s32 %s42, 1
      %p46 = scmp.eq.s32.totalorder %s15, 1
      %p47 = scmp.ne.s32.totalorder %s42, %s44
      %p48 = scmp.eq.s32.totalorder %s15, 0
      %p49 = por %p47, %p48
      %p50 = scmp.ne.s32.totalorder %s42, %s44
      %p51 = scmp.eq.s32.totalorder %s20, 1
      %p52 = por %p50, %p51
      %p53 = scmp.ne.s32.totalorder %s44, %s45
      %p54 = scmp.eq.s32.totalorder %s20, 0
      %p55 = por %p53, %p54
      %p56 = scmp.ne.s32.totalorder %s44, %s45
      %p57 = scmp.eq.s32.totalorder %s21, 1
      %p58 = por %p56, %p57
      %p60 = scmp.ne.s32.totalorder %s45, %s59
      %p61 = scmp.eq.s32.totalorder %s21, 0
      %p62 = por %p60, %p61
      %s63 = ssub.s32 %s22, %s41
      %s64 = ssub.s32 %s23, %s37
      %s65 = sor.u32 %s63, %s64
      %s66 = ssub.s32 %s24, %s33
      %s67 = sor.u32 %s65, %s66
      %p68 = scmp.eq.s32.totalorder %s67, 0
      %s70 = sadd.s32 %s69, 1
      %s71 = scalar_select %p68, %s69, %s70
      %p74 = pneg %p68
      %p75 = scmp.eq.s32.totalorder %s15, 1
      %p76 = por %p74, %p75
      %p77 = scmp.ne.s32.totalorder %s69, %s72
      %p78 = scmp.eq.s32.totalorder %s15, 0
      %p79 = por %p77, %p78
      %p80 = scmp.ne.s32.totalorder %s69, %s72
      %p81 = scmp.eq.s32.totalorder %s20, 1
      %p82 = por %p80, %p81
      %p83 = scmp.ne.s32.totalorder %s72, %s73
      %p84 = scmp.eq.s32.totalorder %s20, 0
      %p85 = por %p83, %p84
      %p86 = scmp.ne.s32.totalorder %s72, %s73
      %p87 = scmp.eq.s32.totalorder %s21, 1
      %p88 = por %p86, %p87
      %p90 = scmp.ne.s32.totalorder %s73, %s89
      %p91 = scmp.eq.s32.totalorder %s21, 0
      %p92 = por %p90, %p91
      %s93 = ssub.s32 %s22, %s41
      %s94 = ssub.s32 %s23, %s37
      %s95 = sor.u32 %s93, %s94
      %p96 = scmp.eq.s32.totalorder %s95, 0
      %s98 = sadd.s32 %s97, 1
      %s99 = scalar_select %p96, %s97, %s98
      %p102 = pneg %p96
      %p103 = scmp.eq.s32.totalorder %s15, 1
      %p104 = por %p102, %p103
      %p105 = scmp.ne.s32.totalorder %s97, %s100
      %p106 = scmp.eq.s32.totalorder %s15, 0
      %p107 = por %p105, %p106
      %p108 = scmp.ne.s32.totalorder %s97, %s100
      %p109 = scmp.eq.s32.totalorder %s20, 1
      %p110 = por %p108, %p109
      %p111 = scmp.ne.s32.totalorder %s100, %s101
      %p112 = scmp.eq.s32.totalorder %s20, 0
      %p113 = por %p111, %p112
      %p114 = scmp.ne.s32.totalorder %s100, %s101
      %p115 = scmp.eq.s32.totalorder %s21, 1
      %p116 = por %p114, %p115
      %p118 = scmp.ne.s32.totalorder %s101, %s117
      %p119 = scmp.eq.s32.totalorder %s21, 0
      %p120 = por %p118, %p119
      %p121 = scmp.le.s32.totalorder 1, %s15
      %p122 = scmp.lt.s32.totalorder %s15, 3
      %p123 = pnand %p121, %p122
      %p124 = pneg %p123
      // Predicated region
      $region9: #{tpu_custom_call.1} parent=5 // pred_check
        _
      $region10: #{tpu_custom_call.1} parent=5 // pred_check_branch
        %126 = sbr.rel (%p123) target = $region12
      $region11: #{tpu_custom_call.1} parent=5 // pred_region
        %s127 = ssub.s32 %s15, 1
        // Predicated region
        $region13: #{tpu_custom_call.1} parent=11 // pred_check
          %p128 = pneg %p55
        $region14: #{tpu_custom_call.1} parent=11 // pred_check_branch
          %130 = sbr.rel (%p128) target = $region16
        $region15: #{tpu_custom_call.1} parent=11 // pred_region
          _
        $region16: #{tpu_custom_call.1} parent=11 // pred_fallthru
          _
      $region12: #{tpu_custom_call.1} parent=5 // pred_fallthru
        _
      %p131 = scmp.lt.s32.totalorder %s15, 2
      // Predicated region
      $region17: #{tpu_custom_call.1} parent=5 // pred_check
        %p132 = pneg %p131
      $region18: #{tpu_custom_call.1} parent=5 // pred_check_branch
        %134 = sbr.rel (%p132) target = $region20
      $region19: #{tpu_custom_call.1} parent=5 // pred_region
        // Predicated region
        $region21: #{tpu_custom_call.1} parent=19 // pred_check
          %p135 = pneg %p79
        $region22: #{tpu_custom_call.1} parent=19 // pred_check_branch
          %137 = sbr.rel (%p135) target = $region24
        $region23: #{tpu_custom_call.1} parent=19 // pred_region
          %s138 = sand.u32 %s69, 1
          %s139 = scalar_lea.sflag [#allocation5], %s138
          %s140 = sand.u32 %s69, 1
          %s141 = smul.addr %s140, 8
          %s142 = scalar_lea.vmem [#allocation4], %s141
          %s143 = smul.u32 2, %s24
          %s145 = ssub.s32 128, 128
          %146 = vsyncadd %s139, %s145
          %s147 = smul.addr %s23, 2
          %s148 = sadd.s32 %s143, %s147
          %s149 = smul.addr %s22, 2
          %s150 = sadd.s32 %s148, %s149
          %s151 = smul.addr %s150, 64
          %s152 = scalar_lea.hbm %s1, %s151
          %s154 = sshll.u32 %s142, 4
          %s155 = int_to_ptr.vmem [resolvable:$true] %s154
          %157 = dma.hbm_to_vmem [thread:$0]  %s152, 128, %s155, %s139
        $region24: #{tpu_custom_call.1} parent=19 // pred_fallthru
          _
      $region20: #{tpu_custom_call.1} parent=5 // pred_fallthru
        _
      %p158 = scmp.le.s32.totalorder 1, %s15
      %p159 = scmp.lt.s32.totalorder %s15, 3
      %p160 = pnand %p158, %p159
      %p161 = pneg %p160
      // Predicated region
      $region25: #{tpu_custom_call.1} parent=5 // pred_check
        _
      $region26: #{tpu_custom_call.1} parent=5 // pred_check_branch
        %163 = sbr.rel (%p160) target = $region28
      $region27: #{tpu_custom_call.1} parent=5 // pred_region
        %s164 = ssub.s32 %s15, 1
        %s165 = sand.u32 %s72, 1
        %s166 = scalar_lea.sflag [#allocation5], %s165
        %s167 = sand.u32 %s72, 1
        %s168 = smul.addr %s167, 8
        %s169 = scalar_lea.vmem [#allocation4], %s168
        // Predicated region
        $region29: #{tpu_custom_call.1} parent=27 // pred_check
          %p170 = pneg %p85
        $region30: #{tpu_custom_call.1} parent=27 // pred_check_branch
          %172 = sbr.rel (%p170) target = $region32
        $region31: #{tpu_custom_call.1} parent=27 // pred_region
          %173 = dma.done %s166, 128
        $region32: #{tpu_custom_call.1} parent=27 // pred_fallthru
          _
        %p174 = pneg %p55
        %p175 = pneg %p52
        %s176 = sand.u32 %s72, 1
        %s177 = scalar_lea.sflag [#allocation5], %s176
        %s178 = sand.u32 %s72, 1
        %s179 = smul.addr %s178, 8
        %s180 = scalar_lea.vmem [#allocation4], %s179
        %p181 = pneg %p85
        %p182 = pneg %p82
        %p183 = pneg %p113
        %p184 = pneg %p110
        %s185 = sand.u32 %s100, 1
        %s186 = scalar_lea.sflag [#allocation6], %s185
        %s187 = sand.u32 %s100, 1
        %s188 = scalar_lea.vmem [#allocation7], %s187
        %s189 = smul.u32 2, %s27
        %p190 = scmp.eq.s32.totalorder %s27, 0
        // Predicated region
        $region33: #{tpu_custom_call.1} parent=27 // pred_check
          %p191 = pneg %p190
        $region34: #{tpu_custom_call.1} parent=27 // pred_check_branch
          %193 = sbr.rel (%p191) target = $region36
        $region35: #{tpu_custom_call.1} parent=27 // pred_region
          %vm194 = vcmask 24576
          %195 = vst.msk [vmem:[#allocation2] sm:$0x1] %vm194, 0.0
        $region36: #{tpu_custom_call.1} parent=27 // pred_fallthru
          _
        %v196 = vld [vmem:[%s169] sm:$0xff]
        %v197 = vmax.f32 %v196, 1e-06
        %s198 = sld [smem:[#allocation3]]
        %v199 = vstv %s198
        %v200 = vpow.f32 %v197, %v199
        %v201 = vld [vmem:[#allocation2] sm:$0x1]
        %v203 = vcombine.high %v200, %v200
        %vm205 = vcmask 1043456
        %v206 = vsel %vm205, %v200, 0.0
        %v207 = vsel %vm205, %v203, 0.0
        %v208 = vadd.f32 %v206, %v207
        %209 = vadd.xlane.f32.xlu0 %v208
        %v210 = vpop.xlane.xlu0 %209
        %v212 = vlaneseq
        %v213 = vshrl.u32 %v212, 7
        %v214 = vsub.s32 0, %v213
        %v215 = vrot.slane %v210, %v214
        %v216 = vlaneseq
        %v217 = vshrl.u32 %v216, 7
        %v218 = vsub.s32 1, %v217
        %v219 = vrot.slane %v210, %v218
        %v220 = vlaneseq
        %v221 = vshrl.u32 %v220, 7
        %v222 = vsub.s32 2, %v221
        %v223 = vrot.slane %v210, %v222
        %v224 = vlaneseq
        %v225 = vshrl.u32 %v224, 7
        %v226 = vsub.s32 3, %v225
        %v227 = vrot.slane %v210, %v226
        %v228 = vcombine.low %v215, %v219
        %v229 = vcombine.low %v223, %v227
        %v231 = vunpack.c.l.s4 1966171168
        %v232 = vunpack.c.0.s8 %v231
        %v233 = vlaneseq
        %v234 = vshrl.u32 %v233, 7
        %v235 = vsub.s32 %v232, %v234
        %v236 = vrot.slane %v228, %v235
        %v238 = vunpack.c.l.s4 1966171168
        %v239 = vunpack.c.0.s8 %v238
        %v240 = vlaneseq
        %v241 = vshrl.u32 %v240, 7
        %v242 = vsub.s32 %v239, %v241
        %v243 = vrot.slane %v229, %v242
        %v244 = vcombine.low %v236, %v243
        %v246 = vunpack.c.l.s4 1966171168
        %v247 = vunpack.c.0.s8 %v246
        %v248 = vlaneseq
        %v249 = vshrl.u32 %v248, 7
        %v250 = vsub.s32 %v247, %v249
        %v251 = vrot.slane %v244, %v250
        %252 = vset.pattern.permute.xlu0 0
        %253 = vperm.xlu0 %252, %v251
        %v254 = vpop.permute.xlu0 %253
        %v255 = vlaneseq
        %v256 = vand.u32 %v255, 127
        %v257 = vlaneseq
        %v258 = vshrl.u32 %v257, 7
        %v259 = vsub.s32 %v256, %v258
        %v260 = vrot.slane %v254, %v259
        %v262 = vunpack.c.l.s4 1966171168
        %v263 = vunpack.c.0.s8 %v262
        %v264 = vlaneseq
        %v265 = vshrl.u32 %v264, 7
        %v266 = vsub.s32 %v263, %v265
        %v267 = vrot.slane %v260, %v266
        %v269 = vunpack.c.l.s4 1966171168
        %v270 = vunpack.c.0.s8 %v269
        %v271 = vlaneseq
        %v272 = vshrl.u32 %v271, 7
        %v273 = vsub.s32 %v270, %v272
        %v274 = vrot.slane %v267, %v273
        %v276 = vadd.f32 %v201, %v274
        %vm277 = vcmask 24576
        %278 = vst.msk [vmem:[#allocation2] sm:$0x1] %vm277, %v276
        // Predicated region
        $region37: #{tpu_custom_call.1} parent=27 // pred_check
          %p279 = pneg %p190
        $region38: #{tpu_custom_call.1} parent=27 // pred_check_branch
          %281 = sbr.rel (%p279) target = $region40
        $region39: #{tpu_custom_call.1} parent=27 // pred_region
          %s282 = sld [smem:[#allocation3]]
          %v283 = vld [vmem:[#allocation2] sm:$0x1]
          %v284 = vmul.f32 %v283, 0.00390625
          %v285 = vstv %s282
          %v286 = vrcp.pop %v285
          %s287 = vtos %v286
          %v288 = vstv %s287
          %v289 = vpow.f32 %v284, %v288
          %290 = vst.msk [vmem:[%s188] sm:$0x1] %vm277, %v289
        $region40: #{tpu_custom_call.1} parent=27 // pred_fallthru
          _
        %s291 = sand.u32 %s100, 1
        %s292 = scalar_lea.sflag [#allocation6], %s291
        %s293 = sand.u32 %s100, 1
        %s294 = scalar_lea.vmem [#allocation7], %s293
        // Predicated region
        $region41: #{tpu_custom_call.1} parent=27 // pred_check
          %p295 = pneg %p110
        $region42: #{tpu_custom_call.1} parent=27 // pred_check_branch
          %297 = sbr.rel (%p295) target = $region44
        $region43: #{tpu_custom_call.1} parent=27 // pred_region
          %s299 = ssub.s32 16, 16
          %300 = vsyncadd %s292, %s299
          %s301 = sadd.s32 %s26, %s25
          %s302 = smul.addr %s301, 16
          %s303 = scalar_lea.hbm %s2, %s302
          %s305 = sshll.u32 %s294, 4
          %s306 = int_to_ptr.vmem [resolvable:$true] %s305
          %308 = dma.vmem_to_hbm [thread:$0]  %s306, 16, %s303, %s292
        $region44: #{tpu_custom_call.1} parent=27 // pred_fallthru
          _
      $region28: #{tpu_custom_call.1} parent=5 // pred_fallthru
        _
      %p309 = scmp.le.s32.totalorder 2, %s15
      // Predicated region
      $region45: #{tpu_custom_call.1} parent=5 // pred_check
        %p310 = pneg %p309
      $region46: #{tpu_custom_call.1} parent=5 // pred_check_branch
        %312 = sbr.rel (%p310) target = $region48
      $region47: #{tpu_custom_call.1} parent=5 // pred_region
        %s313 = ssub.s32 %s15, 2
        // Predicated region
        $region49: #{tpu_custom_call.1} parent=47 // pred_check
          %p314 = pneg %p116
        $region50: #{tpu_custom_call.1} parent=47 // pred_check_branch
          %316 = sbr.rel (%p314) target = $region52
        $region51: #{tpu_custom_call.1} parent=47 // pred_region
          %s317 = sand.u32 %s101, 1
          %s318 = scalar_lea.sflag [#allocation6], %s317
          %s319 = sand.u32 %s101, 1
          %s320 = scalar_lea.vmem [#allocation7], %s319
          %321 = dma.done %s318, 16
        $region52: #{tpu_custom_call.1} parent=47 // pred_fallthru
          _
      $region48: #{tpu_custom_call.1} parent=5 // pred_fallthru
        _
    $region6: #{tpu_custom_call.1} parent=1 // loop_footer
      %s19 = sadd.s32 1, %s15
    $region7: #{tpu_custom_call.1} parent=1 // loop_footer_branch
      %14 = sbr.rel target = $region3
    $region8: #{tpu_custom_call.1} parent=1 // loop_exit
      _
    %322 = vsyncpa [#allocation5], 1
    %s323 = scalar_lea.sflag [#allocation5], 1
    %324 = vsyncpa %s323, 1
    %325 = vsyncpa [#allocation6], 1
    %s326 = scalar_lea.sflag [#allocation6], 1
    %327 = vsyncpa %s326, 1

</llo_original>
